<compile_context>
chip_gen: v5e
topology: v5e:2x2
jax: 0.10.0
libtpu: 0.0.40
codegen_flags: <defaults>
</compile_context>

<pallas_src>
import numpy as np
import jax
import jax.numpy as jnp
from jax import lax
from jax.experimental import pallas as pl
from jax.experimental.pallas import tpu as pltpu

HIDDEN_SIZE = 64
INPUT_SIZE = 54
NUM_CLASSES = 4
NUM_LAYERS = 1  # forward only uses a single layer

_SUBLANE = 8     # f32 sublane multiple
_D_PAD = 64      # pad the projection K dim 54 -> 64
_C_PAD = 128     # lane-dense fc output width


def _round_up(n, m):
    return (n + m - 1) // m * m


def lstm_fc_kernel(x_ref, wih_ref, whh_ref, b_ref, wfc_ref, bfc_ref,
                   out_ref, xw_scr):
    """LSTM recurrence + final Linear, fully in VMEM.

    x_ref   : (T*Bp, Dp)  time-major, batch-padded, flattened input
    wih_ref : (Dp, 4H)    input->gates weight (transposed, K padded,
                          i/f/o columns pre-scaled by 0.5)
    whh_ref : (H, 4H)     hidden->gates weight (transposed, i/f/o * 0.5)
    b_ref   : (1, 4H)     (b_ih + b_hh), i/f/o columns pre-scaled by 0.5
    wfc_ref : (H, Cp)     fc weight (transposed, zero-padded to 128 lanes)
    bfc_ref : (1, Cp)     fc bias (zero-padded)
    out_ref : (Bp, Cp)    lane-dense logits for the last timestep
    xw_scr  : (T*Bp, 4H)  VMEM scratch holding the hoisted input projection
    """
    Bp = out_ref.shape[0]
    H = whh_ref.shape[0]
    H4 = 4 * H
    T = xw_scr.shape[0] // Bp

    # ---- Hoisted input projection: one big MXU matmul, bias folded in. ----
    xw_scr[...] = (
        jnp.dot(x_ref[...], wih_ref[...], preferred_element_type=jnp.float32)
        + b_ref[...]
    )

    # Load the recurrent weight into vregs once (loop-invariant).
    whh = whh_ref[...]

    # Lane mask for the tanh gate (g, columns [2H, 3H)), hoisted out of the
    # recurrence so the broadcasted_iota is materialized exactly once.
    col = lax.broadcasted_iota(jnp.int32, (Bp, H4), 1)
    g_mask = (col >= 2 * H) & (col < 3 * H)

    h0 = jnp.zeros((Bp, H), jnp.float32)
    c0 = jnp.zeros((Bp, H), jnp.float32)

    def step(t, carry):
        h, c = carry
        # Sublane-aligned slice of the precomputed projection for timestep t.
        base = pl.multiple_of(t * Bp, _SUBLANE)
        gates = xw_scr[pl.ds(base, Bp), :] + jnp.dot(
            h, whh, preferred_element_type=jnp.float32
        )  # (Bp, 4H), PyTorch gate order: i, f, g, o (i/f/o pre-halved)

        # Single EUP pass: tanh over the full 2-vreg gate block, then a
        # VPU-only fixup turns the i/f/o lanes into sigmoid(z)=0.5*tanh(z/2)+0.5.
        y = jnp.tanh(gates)
        act = jnp.where(g_mask, y, 0.5 * y + 0.5)

        i_g = act[:, 0 * H:1 * H]
        f_g = act[:, 1 * H:2 * H]
        g_g = act[:, 2 * H:3 * H]
        o_g = act[:, 3 * H:4 * H]

        c_new = f_g * c + i_g * g_g
        h_new = o_g * jnp.tanh(c_new)
        return (h_new, c_new)

    # Short fixed trip count -> unroll so the LLO scheduler can overlap the
    # MXU drain of step t with the elementwise epilogue of step t-1.
    h_last, _ = lax.fori_loop(0, T, step, (h0, c0), unroll=True)

    # fc on the last hidden state: out = h_T @ W_fc^T + b_fc (lane-dense).
    out_ref[...] = (
        jnp.dot(h_last, wfc_ref[...], preferred_element_type=jnp.float32)
        + bfc_ref[...]
    )


def rnn_forward(x, params):
    """x: (B, T, D_in) float32, batch_first (PyTorch convention)."""
    B, T, D = x.shape
    H, C = HIDDEN_SIZE, NUM_CLASSES

    Bp = _round_up(max(B, _SUBLANE), _SUBLANE)   # pad batch to sublane multiple
    Dp = max(_D_PAD, _round_up(D, _SUBLANE))     # pad K dim 54 -> 64
    Cp = _C_PAD                                  # lane-dense output width

    # Time-major, batch/feature padded, flattened to 2-D (no in-kernel reshape).
    x_tm = jnp.transpose(x, (1, 0, 2)).astype(jnp.float32)        # (T, B, D)
    x_tm = jnp.pad(x_tm, ((0, 0), (0, Bp - B), (0, Dp - D)))      # (T, Bp, Dp)
    x_flat = x_tm.reshape(T * Bp, Dp)                             # (T*Bp, Dp)

    # sigmoid(z) = 0.5 * (1 + tanh(z/2)): pre-scale the i/f/o gate columns of
    # the weights and the folded bias by 0.5 so the kernel only needs tanh.
    gate_scale = jnp.concatenate([
        jnp.full((2 * H,), 0.5, jnp.float32),    # i, f
        jnp.ones((H,), jnp.float32),             # g (tanh gate, unscaled)
        jnp.full((H,), 0.5, jnp.float32),        # o
    ]).reshape(1, 4 * H)

    wih_t = jnp.pad(params["w_ih"].T, ((0, Dp - D), (0, 0))) * gate_scale  # (Dp, 4H)
    whh_t = params["w_hh"].T * gate_scale                                  # (H, 4H)
    bias = (params["b_ih"] + params["b_hh"]).reshape(1, 4 * H) * gate_scale
    wfc_t = jnp.pad(params["w_fc"].T, ((0, 0), (0, Cp - C)))               # (H, Cp)
    bfc = jnp.pad(params["b_fc"].reshape(1, C), ((0, 0), (0, Cp - C)))     # (1, Cp)

    vmem = pl.BlockSpec(memory_space=pltpu.MemorySpace.VMEM)

    out = pl.pallas_call(
        lstm_fc_kernel,
        out_shape=jax.ShapeDtypeStruct((Bp, Cp), jnp.float32),
        in_specs=[vmem] * 6,
        out_specs=vmem,
        scratch_shapes=[
            pltpu.VMEM((T * Bp, 4 * H), jnp.float32),  # hoisted x @ W_ih + b
        ],
    )(x_flat, wih_t, whh_t, bias, wfc_t, bfc)
    return out[:B, :C]


def init_params(key):
    """Deterministic init mimicking PyTorch's uniform(-1/sqrt(H), 1/sqrt(H))."""
    H, D, C = HIDDEN_SIZE, INPUT_SIZE, NUM_CLASSES
    k = 1.0 / np.sqrt(H)
    keys = jax.random.split(key, 6)
    return {
        "w_ih": jax.random.uniform(keys[0], (4 * H, D), jnp.float32, -k, k),
        "w_hh": jax.random.uniform(keys[1], (4 * H, H), jnp.float32, -k, k),
        "b_ih": jax.random.uniform(keys[2], (4 * H,), jnp.float32, -k, k),
        "b_hh": jax.random.uniform(keys[3], (4 * H,), jnp.float32, -k, k),
        "w_fc": jax.random.uniform(keys[4], (C, H), jnp.float32, -k, k),
        "b_fc": jax.random.uniform(keys[5], (C,), jnp.float32, -k, k),
    }


def rnn_reference(x, params):
    """Pure-JAX reference of the same forward pass (correctness check)."""
    H = HIDDEN_SIZE
    B, T, _ = x.shape
    h = jnp.zeros((B, H), jnp.float32)
    c = jnp.zeros((B, H), jnp.float32)
    bias = params["b_ih"] + params["b_hh"]
    for t in range(T):
        gates = x[:, t, :] @ params["w_ih"].T + h @ params["w_hh"].T + bias
        i_g = jax.nn.sigmoid(gates[:, 0 * H:1 * H])
        f_g = jax.nn.sigmoid(gates[:, 1 * H:2 * H])
        g_g = jnp.tanh(gates[:, 2 * H:3 * H])
        o_g = jax.nn.sigmoid(gates[:, 3 * H:4 * H])
        c = f_g * c + i_g * g_g
        h = o_g * jnp.tanh(c)
    return h @ params["w_fc"].T + params["b_fc"]


if __name__ == "__main__":
    key = jax.random.PRNGKey(0)
    pkey, xkey = jax.random.split(key)
    params = init_params(pkey)

    B, T = 2, 8
    x = jax.random.normal(xkey, (B, T, INPUT_SIZE), jnp.float32)

    out = jax.block_until_ready(rnn_forward(x, params))
    ref = jax.block_until_ready(rnn_reference(x, params))

    assert out.shape == (B, NUM_CLASSES)
    np.testing.assert_allclose(np.asarray(out), np.asarray(ref),
                               rtol=1e-5, atol=1e-5)
    print("KERNEL_OK")
</pallas_src>

<mosaic_0001>
module attributes {stable_mosaic.version = 11 : i64} {
  func.func @lstm_fc_kernel(%arg0: memref<64x64xf32, #tpu.memory_space<vmem>>, %arg1: memref<64x256xf32, #tpu.memory_space<vmem>>, %arg2: memref<64x256xf32, #tpu.memory_space<vmem>>, %arg3: memref<1x256xf32, #tpu.memory_space<vmem>>, %arg4: memref<64x128xf32, #tpu.memory_space<vmem>>, %arg5: memref<1x128xf32, #tpu.memory_space<vmem>>, %arg6: memref<8x128xf32, #tpu.memory_space<vmem>>, %arg7: memref<64x256xf32, #tpu.memory_space<vmem>>) attributes {dimension_semantics = [], scalar_prefetch = 0 : i64, scratch_operands = 1 : i64, tpu.core_type = #tpu.core_type<tc>} {
    %c0 = arith.constant 0 : index
    %c0_0 = arith.constant 0 : index
    %0 = vector.load %arg0[%c0, %c0_0] : memref<64x64xf32, #tpu.memory_space<vmem>>, vector<64x64xf32>
    %c0_1 = arith.constant 0 : index
    %c0_2 = arith.constant 0 : index
    %1 = vector.load %arg1[%c0_1, %c0_2] : memref<64x256xf32, #tpu.memory_space<vmem>>, vector<64x256xf32>
    %cst = arith.constant dense<0.000000e+00> : vector<64x256xf32>
    %2 = tpu.matmul %0, %1, %cst {dimension_numbers = #tpu.dot_dimension_numbers<[1], [0], [0], [1], [0, 0, 1, 1], [], []>} : vector<64x64xf32>, vector<64x256xf32>, vector<64x256xf32> -> vector<64x256xf32>
    %c0_3 = arith.constant 0 : index
    %c0_4 = arith.constant 0 : index
    %3 = vector.load %arg3[%c0_3, %c0_4] : memref<1x256xf32, #tpu.memory_space<vmem>>, vector<1x256xf32>
    %4 = vector.broadcast %3 : vector<1x256xf32> to vector<64x256xf32>
    %5 = arith.addf %2, %4 : vector<64x256xf32>
    %c0_5 = arith.constant 0 : index
    %c0_6 = arith.constant 0 : index
    %6 = vector.load %arg7[%c0_5, %c0_6] : memref<64x256xf32, #tpu.memory_space<vmem>>, vector<64x256xf32>
    tpu.vector_store %arg7[%c0_5, %c0_6], %5 {strides = array<i32>} : memref<64x256xf32, #tpu.memory_space<vmem>>, vector<64x256xf32>,
    %c0_7 = arith.constant 0 : index
    %c0_8 = arith.constant 0 : index
    %7 = vector.load %arg2[%c0_7, %c0_8] : memref<64x256xf32, #tpu.memory_space<vmem>>, vector<64x256xf32>
    %8 = tpu.iota {dimensions = array<i32: 1>} : vector<8x256xi32>
    %c128_i32 = arith.constant 128 : i32
    %9 = vector.broadcast %c128_i32 : i32 to vector<8x256xi32>
    %10 = arith.cmpi sge, %8, %9 : vector<8x256xi32>
    %c192_i32 = arith.constant 192 : i32
    %11 = vector.broadcast %c192_i32 : i32 to vector<8x256xi32>
    %12 = arith.cmpi slt, %8, %11 : vector<8x256xi32>
    %13 = arith.andi %10, %12 : vector<8x256xi1>
    %cst_9 = arith.constant 0.000000e+00 : f32
    %14 = vector.broadcast %cst_9 : f32 to vector<8x64xf32>
    %cst_10 = arith.constant 0.000000e+00 : f32
    %15 = vector.broadcast %cst_10 : f32 to vector<8x64xf32>
    %c0_i32 = arith.constant 0 : i32
    %c8_i32 = arith.constant 8 : i32
    %16 = arith.muli %c0_i32, %c8_i32 : i32
    %17 = tpu.assume_multiple %16, 8 : i32
    %18 = arith.index_cast %17 : i32 to index
    %c0_11 = arith.constant 0 : index
    %19 = vector.load %arg7[%18, %c0_11] : memref<64x256xf32, #tpu.memory_space<vmem>>, vector<8x256xf32>
    %cst_12 = arith.constant dense<0.000000e+00> : vector<8x256xf32>
    %20 = tpu.matmul %14, %7, %cst_12 {dimension_numbers = #tpu.dot_dimension_numbers<[1], [0], [0], [1], [0, 0, 1, 1], [], []>} : vector<8x64xf32>, vector<64x256xf32>, vector<8x256xf32> -> vector<8x256xf32>
    %21 = arith.addf %19, %20 : vector<8x256xf32>
    %22 = math.tanh %21 : vector<8x256xf32>
    %cst_13 = arith.constant 5.000000e-01 : f32
    %23 = vector.broadcast %cst_13 : f32 to vector<8x256xf32>
    %24 = arith.mulf %23, %22 : vector<8x256xf32>
    %cst_14 = arith.constant 5.000000e-01 : f32
    %25 = vector.broadcast %cst_14 : f32 to vector<8x256xf32>
    %26 = arith.addf %24, %25 : vector<8x256xf32>
    %27 = arith.select %13, %22, %26 : vector<8x256xi1>, vector<8x256xf32>
    %28 = vector.extract_strided_slice %27 {offsets = [0, 0], sizes = [8, 64], strides = [1, 1]} : vector<8x256xf32> to vector<8x64xf32>
    %29 = vector.extract_strided_slice %27 {offsets = [0, 64], sizes = [8, 64], strides = [1, 1]} : vector<8x256xf32> to vector<8x64xf32>
    %30 = vector.extract_strided_slice %27 {offsets = [0, 128], sizes = [8, 64], strides = [1, 1]} : vector<8x256xf32> to vector<8x64xf32>
    %31 = vector.extract_strided_slice %27 {offsets = [0, 192], sizes = [8, 64], strides = [1, 1]} : vector<8x256xf32> to vector<8x64xf32>
    %32 = arith.mulf %29, %15 : vector<8x64xf32>
    %33 = arith.mulf %28, %30 : vector<8x64xf32>
    %34 = arith.addf %32, %33 : vector<8x64xf32>
    %35 = math.tanh %34 : vector<8x64xf32>
    %36 = arith.mulf %31, %35 : vector<8x64xf32>
    %c1_i32 = arith.constant 1 : i32
    %c8_i32_15 = arith.constant 8 : i32
    %37 = arith.muli %c1_i32, %c8_i32_15 : i32
    %38 = tpu.assume_multiple %37, 8 : i32
    %39 = arith.index_cast %38 : i32 to index
    %c0_16 = arith.constant 0 : index
    %40 = vector.load %arg7[%39, %c0_16] : memref<64x256xf32, #tpu.memory_space<vmem>>, vector<8x256xf32>
    %cst_17 = arith.constant dense<0.000000e+00> : vector<8x256xf32>
    %41 = tpu.matmul %36, %7, %cst_17 {dimension_numbers = #tpu.dot_dimension_numbers<[1], [0], [0], [1], [0, 0, 1, 1], [], []>} : vector<8x64xf32>, vector<64x256xf32>, vector<8x256xf32> -> vector<8x256xf32>
    %42 = arith.addf %40, %41 : vector<8x256xf32>
    %43 = math.tanh %42 : vector<8x256xf32>
    %cst_18 = arith.constant 5.000000e-01 : f32
    %44 = vector.broadcast %cst_18 : f32 to vector<8x256xf32>
    %45 = arith.mulf %44, %43 : vector<8x256xf32>
    %cst_19 = arith.constant 5.000000e-01 : f32
    %46 = vector.broadcast %cst_19 : f32 to vector<8x256xf32>
    %47 = arith.addf %45, %46 : vector<8x256xf32>
    %48 = arith.select %13, %43, %47 : vector<8x256xi1>, vector<8x256xf32>
    %49 = vector.extract_strided_slice %48 {offsets = [0, 0], sizes = [8, 64], strides = [1, 1]} : vector<8x256xf32> to vector<8x64xf32>
    %50 = vector.extract_strided_slice %48 {offsets = [0, 64], sizes = [8, 64], strides = [1, 1]} : vector<8x256xf32> to vector<8x64xf32>
    %51 = vector.extract_strided_slice %48 {offsets = [0, 128], sizes = [8, 64], strides = [1, 1]} : vector<8x256xf32> to vector<8x64xf32>
    %52 = vector.extract_strided_slice %48 {offsets = [0, 192], sizes = [8, 64], strides = [1, 1]} : vector<8x256xf32> to vector<8x64xf32>
    %53 = arith.mulf %50, %34 : vector<8x64xf32>
    %54 = arith.mulf %49, %51 : vector<8x64xf32>
    %55 = arith.addf %53, %54 : vector<8x64xf32>
    %56 = math.tanh %55 : vector<8x64xf32>
    %57 = arith.mulf %52, %56 : vector<8x64xf32>
    %c2_i32 = arith.constant 2 : i32
    %c8_i32_20 = arith.constant 8 : i32
    %58 = arith.muli %c2_i32, %c8_i32_20 : i32
    %59 = tpu.assume_multiple %58, 8 : i32
    %60 = arith.index_cast %59 : i32 to index
    %c0_21 = arith.constant 0 : index
    %61 = vector.load %arg7[%60, %c0_21] : memref<64x256xf32, #tpu.memory_space<vmem>>, vector<8x256xf32>
    %cst_22 = arith.constant dense<0.000000e+00> : vector<8x256xf32>
    %62 = tpu.matmul %57, %7, %cst_22 {dimension_numbers = #tpu.dot_dimension_numbers<[1], [0], [0], [1], [0, 0, 1, 1], [], []>} : vector<8x64xf32>, vector<64x256xf32>, vector<8x256xf32> -> vector<8x256xf32>
    %63 = arith.addf %61, %62 : vector<8x256xf32>
    %64 = math.tanh %63 : vector<8x256xf32>
    %cst_23 = arith.constant 5.000000e-01 : f32
    %65 = vector.broadcast %cst_23 : f32 to vector<8x256xf32>
    %66 = arith.mulf %65, %64 : vector<8x256xf32>
    %cst_24 = arith.constant 5.000000e-01 : f32
    %67 = vector.broadcast %cst_24 : f32 to vector<8x256xf32>
    %68 = arith.addf %66, %67 : vector<8x256xf32>
    %69 = arith.select %13, %64, %68 : vector<8x256xi1>, vector<8x256xf32>
    %70 = vector.extract_strided_slice %69 {offsets = [0, 0], sizes = [8, 64], strides = [1, 1]} : vector<8x256xf32> to vector<8x64xf32>
    %71 = vector.extract_strided_slice %69 {offsets = [0, 64], sizes = [8, 64], strides = [1, 1]} : vector<8x256xf32> to vector<8x64xf32>
    %72 = vector.extract_strided_slice %69 {offsets = [0, 128], sizes = [8, 64], strides = [1, 1]} : vector<8x256xf32> to vector<8x64xf32>
    %73 = vector.extract_strided_slice %69 {offsets = [0, 192], sizes = [8, 64], strides = [1, 1]} : vector<8x256xf32> to vector<8x64xf32>
    %74 = arith.mulf %71, %55 : vector<8x64xf32>
    %75 = arith.mulf %70, %72 : vector<8x64xf32>
    %76 = arith.addf %74, %75 : vector<8x64xf32>
    %77 = math.tanh %76 : vector<8x64xf32>
    %78 = arith.mulf %73, %77 : vector<8x64xf32>
    %c3_i32 = arith.constant 3 : i32
    %c8_i32_25 = arith.constant 8 : i32
    %79 = arith.muli %c3_i32, %c8_i32_25 : i32
    %80 = tpu.assume_multiple %79, 8 : i32
    %81 = arith.index_cast %80 : i32 to index
    %c0_26 = arith.constant 0 : index
    %82 = vector.load %arg7[%81, %c0_26] : memref<64x256xf32, #tpu.memory_space<vmem>>, vector<8x256xf32>
    %cst_27 = arith.constant dense<0.000000e+00> : vector<8x256xf32>
    %83 = tpu.matmul %78, %7, %cst_27 {dimension_numbers = #tpu.dot_dimension_numbers<[1], [0], [0], [1], [0, 0, 1, 1], [], []>} : vector<8x64xf32>, vector<64x256xf32>, vector<8x256xf32> -> vector<8x256xf32>
    %84 = arith.addf %82, %83 : vector<8x256xf32>
    %85 = math.tanh %84 : vector<8x256xf32>
    %cst_28 = arith.constant 5.000000e-01 : f32
    %86 = vector.broadcast %cst_28 : f32 to vector<8x256xf32>
    %87 = arith.mulf %86, %85 : vector<8x256xf32>
    %cst_29 = arith.constant 5.000000e-01 : f32
    %88 = vector.broadcast %cst_29 : f32 to vector<8x256xf32>
    %89 = arith.addf %87, %88 : vector<8x256xf32>
    %90 = arith.select %13, %85, %89 : vector<8x256xi1>, vector<8x256xf32>
    %91 = vector.extract_strided_slice %90 {offsets = [0, 0], sizes = [8, 64], strides = [1, 1]} : vector<8x256xf32> to vector<8x64xf32>
    %92 = vector.extract_strided_slice %90 {offsets = [0, 64], sizes = [8, 64], strides = [1, 1]} : vector<8x256xf32> to vector<8x64xf32>
    %93 = vector.extract_strided_slice %90 {offsets = [0, 128], sizes = [8, 64], strides = [1, 1]} : vector<8x256xf32> to vector<8x64xf32>
    %94 = vector.extract_strided_slice %90 {offsets = [0, 192], sizes = [8, 64], strides = [1, 1]} : vector<8x256xf32> to vector<8x64xf32>
    %95 = arith.mulf %92, %76 : vector<8x64xf32>
    %96 = arith.mulf %91, %93 : vector<8x64xf32>
    %97 = arith.addf %95, %96 : vector<8x64xf32>
    %98 = math.tanh %97 : vector<8x64xf32>
    %99 = arith.mulf %94, %98 : vector<8x64xf32>
    %c4_i32 = arith.constant 4 : i32
    %c8_i32_30 = arith.constant 8 : i32
    %100 = arith.muli %c4_i32, %c8_i32_30 : i32
    %101 = tpu.assume_multiple %100, 8 : i32
    %102 = arith.index_cast %101 : i32 to index
    %c0_31 = arith.constant 0 : index
    %103 = vector.load %arg7[%102, %c0_31] : memref<64x256xf32, #tpu.memory_space<vmem>>, vector<8x256xf32>
    %cst_32 = arith.constant dense<0.000000e+00> : vector<8x256xf32>
    %104 = tpu.matmul %99, %7, %cst_32 {dimension_numbers = #tpu.dot_dimension_numbers<[1], [0], [0], [1], [0, 0, 1, 1], [], []>} : vector<8x64xf32>, vector<64x256xf32>, vector<8x256xf32> -> vector<8x256xf32>
    %105 = arith.addf %103, %104 : vector<8x256xf32>
    %106 = math.tanh %105 : vector<8x256xf32>
    %cst_33 = arith.constant 5.000000e-01 : f32
    %107 = vector.broadcast %cst_33 : f32 to vector<8x256xf32>
    %108 = arith.mulf %107, %106 : vector<8x256xf32>
    %cst_34 = arith.constant 5.000000e-01 : f32
    %109 = vector.broadcast %cst_34 : f32 to vector<8x256xf32>
    %110 = arith.addf %108, %109 : vector<8x256xf32>
    %111 = arith.select %13, %106, %110 : vector<8x256xi1>, vector<8x256xf32>
    %112 = vector.extract_strided_slice %111 {offsets = [0, 0], sizes = [8, 64], strides = [1, 1]} : vector<8x256xf32> to vector<8x64xf32>
    %113 = vector.extract_strided_slice %111 {offsets = [0, 64], sizes = [8, 64], strides = [1, 1]} : vector<8x256xf32> to vector<8x64xf32>
    %114 = vector.extract_strided_slice %111 {offsets = [0, 128], sizes = [8, 64], strides = [1, 1]} : vector<8x256xf32> to vector<8x64xf32>
    %115 = vector.extract_strided_slice %111 {offsets = [0, 192], sizes = [8, 64], strides = [1, 1]} : vector<8x256xf32> to vector<8x64xf32>
    %116 = arith.mulf %113, %97 : vector<8x64xf32>
    %117 = arith.mulf %112, %114 : vector<8x64xf32>
    %118 = arith.addf %116, %117 : vector<8x64xf32>
    %119 = math.tanh %118 : vector<8x64xf32>
    %120 = arith.mulf %115, %119 : vector<8x64xf32>
    %c5_i32 = arith.constant 5 : i32
    %c8_i32_35 = arith.constant 8 : i32
    %121 = arith.muli %c5_i32, %c8_i32_35 : i32
    %122 = tpu.assume_multiple %121, 8 : i32
    %123 = arith.index_cast %122 : i32 to index
    %c0_36 = arith.constant 0 : index
    %124 = vector.load %arg7[%123, %c0_36] : memref<64x256xf32, #tpu.memory_space<vmem>>, vector<8x256xf32>
    %cst_37 = arith.constant dense<0.000000e+00> : vector<8x256xf32>
    %125 = tpu.matmul %120, %7, %cst_37 {dimension_numbers = #tpu.dot_dimension_numbers<[1], [0], [0], [1], [0, 0, 1, 1], [], []>} : vector<8x64xf32>, vector<64x256xf32>, vector<8x256xf32> -> vector<8x256xf32>
    %126 = arith.addf %124, %125 : vector<8x256xf32>
    %127 = math.tanh %126 : vector<8x256xf32>
    %cst_38 = arith.constant 5.000000e-01 : f32
    %128 = vector.broadcast %cst_38 : f32 to vector<8x256xf32>
    %129 = arith.mulf %128, %127 : vector<8x256xf32>
    %cst_39 = arith.constant 5.000000e-01 : f32
    %130 = vector.broadcast %cst_39 : f32 to vector<8x256xf32>
    %131 = arith.addf %129, %130 : vector<8x256xf32>
    %132 = arith.select %13, %127, %131 : vector<8x256xi1>, vector<8x256xf32>
    %133 = vector.extract_strided_slice %132 {offsets = [0, 0], sizes = [8, 64], strides = [1, 1]} : vector<8x256xf32> to vector<8x64xf32>
    %134 = vector.extract_strided_slice %132 {offsets = [0, 64], sizes = [8, 64], strides = [1, 1]} : vector<8x256xf32> to vector<8x64xf32>
    %135 = vector.extract_strided_slice %132 {offsets = [0, 128], sizes = [8, 64], strides = [1, 1]} : vector<8x256xf32> to vector<8x64xf32>
    %136 = vector.extract_strided_slice %132 {offsets = [0, 192], sizes = [8, 64], strides = [1, 1]} : vector<8x256xf32> to vector<8x64xf32>
    %137 = arith.mulf %134, %118 : vector<8x64xf32>
    %138 = arith.mulf %133, %135 : vector<8x64xf32>
    %139 = arith.addf %137, %138 : vector<8x64xf32>
    %140 = math.tanh %139 : vector<8x64xf32>
    %141 = arith.mulf %136, %140 : vector<8x64xf32>
    %c6_i32 = arith.constant 6 : i32
    %c8_i32_40 = arith.constant 8 : i32
    %142 = arith.muli %c6_i32, %c8_i32_40 : i32
    %143 = tpu.assume_multiple %142, 8 : i32
    %144 = arith.index_cast %143 : i32 to index
    %c0_41 = arith.constant 0 : index
    %145 = vector.load %arg7[%144, %c0_41] : memref<64x256xf32, #tpu.memory_space<vmem>>, vector<8x256xf32>
    %cst_42 = arith.constant dense<0.000000e+00> : vector<8x256xf32>
    %146 = tpu.matmul %141, %7, %cst_42 {dimension_numbers = #tpu.dot_dimension_numbers<[1], [0], [0], [1], [0, 0, 1, 1], [], []>} : vector<8x64xf32>, vector<64x256xf32>, vector<8x256xf32> -> vector<8x256xf32>
    %147 = arith.addf %145, %146 : vector<8x256xf32>
    %148 = math.tanh %147 : vector<8x256xf32>
    %cst_43 = arith.constant 5.000000e-01 : f32
    %149 = vector.broadcast %cst_43 : f32 to vector<8x256xf32>
    %150 = arith.mulf %149, %148 : vector<8x256xf32>
    %cst_44 = arith.constant 5.000000e-01 : f32
    %151 = vector.broadcast %cst_44 : f32 to vector<8x256xf32>
    %152 = arith.addf %150, %151 : vector<8x256xf32>
    %153 = arith.select %13, %148, %152 : vector<8x256xi1>, vector<8x256xf32>
    %154 = vector.extract_strided_slice %153 {offsets = [0, 0], sizes = [8, 64], strides = [1, 1]} : vector<8x256xf32> to vector<8x64xf32>
    %155 = vector.extract_strided_slice %153 {offsets = [0, 64], sizes = [8, 64], strides = [1, 1]} : vector<8x256xf32> to vector<8x64xf32>
    %156 = vector.extract_strided_slice %153 {offsets = [0, 128], sizes = [8, 64], strides = [1, 1]} : vector<8x256xf32> to vector<8x64xf32>
    %157 = vector.extract_strided_slice %153 {offsets = [0, 192], sizes = [8, 64], strides = [1, 1]} : vector<8x256xf32> to vector<8x64xf32>
    %158 = arith.mulf %155, %139 : vector<8x64xf32>
    %159 = arith.mulf %154, %156 : vector<8x64xf32>
    %160 = arith.addf %158, %159 : vector<8x64xf32>
    %161 = math.tanh %160 : vector<8x64xf32>
    %162 = arith.mulf %157, %161 : vector<8x64xf32>
    %c7_i32 = arith.constant 7 : i32
    %c8_i32_45 = arith.constant 8 : i32
    %163 = arith.muli %c7_i32, %c8_i32_45 : i32
    %164 = tpu.assume_multiple %163, 8 : i32
    %165 = arith.index_cast %164 : i32 to index
    %c0_46 = arith.constant 0 : index
    %166 = vector.load %arg7[%165, %c0_46] : memref<64x256xf32, #tpu.memory_space<vmem>>, vector<8x256xf32>
    %cst_47 = arith.constant dense<0.000000e+00> : vector<8x256xf32>
    %167 = tpu.matmul %162, %7, %cst_47 {dimension_numbers = #tpu.dot_dimension_numbers<[1], [0], [0], [1], [0, 0, 1, 1], [], []>} : vector<8x64xf32>, vector<64x256xf32>, vector<8x256xf32> -> vector<8x256xf32>
    %168 = arith.addf %166, %167 : vector<8x256xf32>
    %169 = math.tanh %168 : vector<8x256xf32>
    %cst_48 = arith.constant 5.000000e-01 : f32
    %170 = vector.broadcast %cst_48 : f32 to vector<8x256xf32>
    %171 = arith.mulf %170, %169 : vector<8x256xf32>
    %cst_49 = arith.constant 5.000000e-01 : f32
    %172 = vector.broadcast %cst_49 : f32 to vector<8x256xf32>
    %173 = arith.addf %171, %172 : vector<8x256xf32>
    %174 = arith.select %13, %169, %173 : vector<8x256xi1>, vector<8x256xf32>
    %175 = vector.extract_strided_slice %174 {offsets = [0, 0], sizes = [8, 64], strides = [1, 1]} : vector<8x256xf32> to vector<8x64xf32>
    %176 = vector.extract_strided_slice %174 {offsets = [0, 64], sizes = [8, 64], strides = [1, 1]} : vector<8x256xf32> to vector<8x64xf32>
    %177 = vector.extract_strided_slice %174 {offsets = [0, 128], sizes = [8, 64], strides = [1, 1]} : vector<8x256xf32> to vector<8x64xf32>
    %178 = vector.extract_strided_slice %174 {offsets = [0, 192], sizes = [8, 64], strides = [1, 1]} : vector<8x256xf32> to vector<8x64xf32>
    %179 = arith.mulf %176, %160 : vector<8x64xf32>
    %180 = arith.mulf %175, %177 : vector<8x64xf32>
    %181 = arith.addf %179, %180 : vector<8x64xf32>
    %182 = math.tanh %181 : vector<8x64xf32>
    %183 = arith.mulf %178, %182 : vector<8x64xf32>
    %c8_i32_50 = arith.constant 8 : i32
    %c0_51 = arith.constant 0 : index
    %c0_52 = arith.constant 0 : index
    %184 = vector.load %arg4[%c0_51, %c0_52] : memref<64x128xf32, #tpu.memory_space<vmem>>, vector<64x128xf32>
    %cst_53 = arith.constant dense<0.000000e+00> : vector<8x128xf32>
    %185 = tpu.matmul %183, %184, %cst_53 {dimension_numbers = #tpu.dot_dimension_numbers<[1], [0], [0], [1], [0, 0, 1, 1], [], []>} : vector<8x64xf32>, vector<64x128xf32>, vector<8x128xf32> -> vector<8x128xf32>
    %c0_54 = arith.constant 0 : index
    %c0_55 = arith.constant 0 : index
    %186 = vector.load %arg5[%c0_54, %c0_55] : memref<1x128xf32, #tpu.memory_space<vmem>>, vector<1x128xf32>
    %187 = vector.broadcast %186 : vector<1x128xf32> to vector<8x128xf32>
    %188 = arith.addf %185, %187 : vector<8x128xf32>
    %c0_56 = arith.constant 0 : index
    %c0_57 = arith.constant 0 : index
    %189 = vector.load %arg6[%c0_56, %c0_57] : memref<8x128xf32, #tpu.memory_space<vmem>>, vector<8x128xf32>
    tpu.vector_store %arg6[%c0_56, %c0_57], %188 {strides = array<i32>} : memref<8x128xf32, #tpu.memory_space<vmem>>, vector<8x128xf32>,
    return
  }
}

</mosaic_0001>

<llo_original>
// kernel: tpu_custom_call.1
$region0: #{tpu_custom_call.1}
  #allocation0 [shape = 'u32[]', space=smem, size = 0x4, offset = 0x4, fixed_abs, tag = 'smem constant byte address 0x4 - core index']
  #allocation1 [shape = 'u32[72,128]{1,0:T(1,128)}', space=vmem, size = 0x9000, scoped, tag = 'internal scratch']
  #allocation2 [shape = 'f32[64,256]{1,0:T(8,128)}', space=vmem, size = 0x10000, scoped, tag = 'scratch operand']
  %s0 = inlined_call_operand.hbm [shape: f32[64,64], index: 0, kind: input, shape index: {}]
  %s1 = inlined_call_operand.hbm [shape: f32[64,256], index: 1, kind: input, shape index: {}]
  %s2 = inlined_call_operand.hbm [shape: f32[64,256], index: 2, kind: input, shape index: {}]
  %s3 = inlined_call_operand.vmem [shape: f32[1,256], index: 3, kind: input, shape index: {}]
  %s4 = inlined_call_operand.hbm [shape: f32[64,128], index: 4, kind: input, shape index: {}]
  %s5 = inlined_call_operand.vmem [shape: f32[1,128], index: 5, kind: input, shape index: {}]
  %s6 = inlined_call_operand.hbm [shape: f32[8,128], index: 6, kind: output, shape index: {}]
  %s7 = sld [smem:[#allocation0]]
  $region50: #{tpu_custom_call.1} parent=0
    _
  %s9 = ssub.s32 1, %s7
  %s10 = scalar_select 0, %s9, %s7
  $region1: #{tpu_custom_call.1} parent=0
    #allocation3 [shape = 'u8[32768]{0}', space=vmem, size = 0x8000, scoped, tag = 'input window, operand 0, single buffered']
    #allocation4 [shape = 's32[1]{0}', space=sflag, size = 0x4, scoped, tag = 'scoped memory for tpu_custom_call.1']
    #allocation5 [shape = 's32[1]{0}', space=sflag, size = 0x4, scoped, tag = 'scoped memory for tpu_custom_call.1']
    #allocation6 [shape = 'u8[65536]{0}', space=vmem, size = 0x10000, scoped, tag = 'input window, operand 1, single buffered']
    #allocation7 [shape = 's32[1]{0}', space=sflag, size = 0x4, scoped, tag = 'scoped memory for tpu_custom_call.1']
    #allocation8 [shape = 'u8[65536]{0}', space=vmem, size = 0x10000, scoped, tag = 'input window, operand 2, single buffered']
    #allocation9 [shape = 'u8[32768]{0}', space=vmem, size = 0x8000, scoped, tag = 'input window, operand 4, single buffered']
    #allocation10 [shape = 's32[1]{0}', space=sflag, size = 0x4, scoped, tag = 'scoped memory for tpu_custom_call.1']
    #allocation11 [shape = 'u8[4096]{0}', space=vmem, size = 0x1000, scoped, tag = 'output window, operand 0, single buffered']
    %11 = vsyncpa [#allocation4], 0
    %12 = vsyncpa [#allocation7], 0
    %13 = vsyncpa [#allocation10], 0
    %14 = vsyncpa [#allocation5], 0
    // Predicated region
    $region2: #{tpu_custom_call.1} parent=1 // pred_check
      _
    $region3: #{tpu_custom_call.1} parent=1 // pred_check_branch
      %16 = sbr.rel (0) target = $region5
    $region4: #{tpu_custom_call.1} parent=1 // pred_region
      %18 = vsyncadd [#allocation4], 0
      %s19 = sshll.u32 %s0, 4
      %s20 = int_to_ptr.hbm [resolvable:$true] %s19
      %s21 = sshll.u32 [#allocation3], 4
      %s22 = int_to_ptr.vmem [resolvable:$true] %s21
      %27 = dma.hbm_to_vmem [thread:$0]  %s20, 1024, %s22, [#allocation4], 128, 128, 8
    $region5: #{tpu_custom_call.1} parent=1 // pred_fallthru
      _
    // Predicated region
    $region6: #{tpu_custom_call.1} parent=1 // pred_check
      _
    $region7: #{tpu_custom_call.1} parent=1 // pred_check_branch
      %29 = sbr.rel (0) target = $region9
    $region8: #{tpu_custom_call.1} parent=1 // pred_region
      %31 = vsyncadd [#allocation7], 0
      %s32 = sshll.u32 %s1, 4
      %s33 = int_to_ptr.hbm [resolvable:$true] %s32
      %s34 = sshll.u32 [#allocation6], 4
      %s35 = int_to_ptr.vmem [resolvable:$true] %s34
      %40 = dma.hbm_to_vmem [thread:$0]  %s33, 2048, %s35, [#allocation7], 256, 256, 16
    $region9: #{tpu_custom_call.1} parent=1 // pred_fallthru
      _
    // Predicated region
    $region10: #{tpu_custom_call.1} parent=1 // pred_check
      _
    $region11: #{tpu_custom_call.1} parent=1 // pred_check_branch
      %42 = sbr.rel (0) target = $region13
    $region12: #{tpu_custom_call.1} parent=1 // pred_region
      %44 = vsyncadd [#allocation7], 0
      %s45 = sshll.u32 %s2, 4
      %s46 = int_to_ptr.hbm [resolvable:$true] %s45
      %s47 = sshll.u32 [#allocation8], 4
      %s48 = int_to_ptr.vmem [resolvable:$true] %s47
      %53 = dma.hbm_to_vmem [thread:$0]  %s46, 2048, %s48, [#allocation7], 256, 256, 16
    $region13: #{tpu_custom_call.1} parent=1 // pred_fallthru
      _
    // Predicated region
    $region14: #{tpu_custom_call.1} parent=1 // pred_check
      _
    $region15: #{tpu_custom_call.1} parent=1 // pred_check_branch
      %55 = sbr.rel (0) target = $region17
    $region16: #{tpu_custom_call.1} parent=1 // pred_region
      _
    $region17: #{tpu_custom_call.1} parent=1 // pred_fallthru
      _
    // Predicated region
    $region18: #{tpu_custom_call.1} parent=1 // pred_check
      _
    $region19: #{tpu_custom_call.1} parent=1 // pred_check_branch
      %57 = sbr.rel (0) target = $region21
    $region20: #{tpu_custom_call.1} parent=1 // pred_region
      %59 = vsyncadd [#allocation10], 0
      %s60 = sshll.u32 %s4, 4
      %s61 = int_to_ptr.hbm [resolvable:$true] %s60
      %s62 = sshll.u32 [#allocation9], 4
      %s63 = int_to_ptr.vmem [resolvable:$true] %s62
      %68 = dma.hbm_to_vmem [thread:$0]  %s61, 1024, %s63, [#allocation10], 128, 128, 8
    $region21: #{tpu_custom_call.1} parent=1 // pred_fallthru
      _
    // Predicated region
    $region22: #{tpu_custom_call.1} parent=1 // pred_check
      _
    $region23: #{tpu_custom_call.1} parent=1 // pred_check_branch
      %70 = sbr.rel (0) target = $region25
    $region24: #{tpu_custom_call.1} parent=1 // pred_region
      _
    $region25: #{tpu_custom_call.1} parent=1 // pred_fallthru
      _
    // Predicated region
    $region26: #{tpu_custom_call.1} parent=1 // pred_check
      _
    $region27: #{tpu_custom_call.1} parent=1 // pred_check_branch
      %72 = sbr.rel (0) target = $region29
    $region28: #{tpu_custom_call.1} parent=1 // pred_region
      %74 = dma.done [#allocation4], 1024
    $region29: #{tpu_custom_call.1} parent=1 // pred_fallthru
      _
    // Predicated region
    $region30: #{tpu_custom_call.1} parent=1 // pred_check
      _
    $region31: #{tpu_custom_call.1} parent=1 // pred_check_branch
      %76 = sbr.rel (0) target = $region33
    $region32: #{tpu_custom_call.1} parent=1 // pred_region
      %78 = dma.done [#allocation7], 2048
    $region33: #{tpu_custom_call.1} parent=1 // pred_fallthru
      _
    // Predicated region
    $region34: #{tpu_custom_call.1} parent=1 // pred_check
      _
    $region35: #{tpu_custom_call.1} parent=1 // pred_check_branch
      %80 = sbr.rel (0) target = $region37
    $region36: #{tpu_custom_call.1} parent=1 // pred_region
      %82 = dma.done [#allocation7], 2048
    $region37: #{tpu_custom_call.1} parent=1 // pred_fallthru
      _
    // Predicated region
    $region38: #{tpu_custom_call.1} parent=1 // pred_check
      _
    $region39: #{tpu_custom_call.1} parent=1 // pred_check_branch
      %84 = sbr.rel (0) target = $region41
    $region40: #{tpu_custom_call.1} parent=1 // pred_region
      %86 = dma.done [#allocation10], 1024
    $region41: #{tpu_custom_call.1} parent=1 // pred_fallthru
      _
    %v87 = vld [vmem:[#allocation3] sm:$0xff]
    %v88 = vld [vmem:[#allocation3 + $0x8] sm:$0xff]
    %v89 = vld [vmem:[#allocation3 + $0x10] sm:$0xff]
    %v90 = vld [vmem:[#allocation3 + $0x18] sm:$0xff]
    %v91 = vld [vmem:[#allocation3 + $0x20] sm:$0xff]
    %v92 = vld [vmem:[#allocation3 + $0x28] sm:$0xff]
    %v93 = vld [vmem:[#allocation3 + $0x30] sm:$0xff]
    %v94 = vld [vmem:[#allocation3 + $0x38] sm:$0xff]
    %v95 = vld [vmem:[#allocation6] sm:$0xff]
    %v96 = vld [vmem:[#allocation6 + $0x8] sm:$0xff]
    %v97 = vld [vmem:[#allocation6 + $0x10] sm:$0xff]
    %v98 = vld [vmem:[#allocation6 + $0x18] sm:$0xff]
    %v99 = vld [vmem:[#allocation6 + $0x20] sm:$0xff]
    %v100 = vld [vmem:[#allocation6 + $0x28] sm:$0xff]
    %v101 = vld [vmem:[#allocation6 + $0x30] sm:$0xff]
    %v102 = vld [vmem:[#allocation6 + $0x38] sm:$0xff]
    %v103 = vld [vmem:[#allocation6 + $0x40] sm:$0xff]
    %v104 = vld [vmem:[#allocation6 + $0x48] sm:$0xff]
    %v105 = vld [vmem:[#allocation6 + $0x50] sm:$0xff]
    %v106 = vld [vmem:[#allocation6 + $0x58] sm:$0xff]
    %v107 = vld [vmem:[#allocation6 + $0x60] sm:$0xff]
    %v108 = vld [vmem:[#allocation6 + $0x68] sm:$0xff]
    %v109 = vld [vmem:[#allocation6 + $0x70] sm:$0xff]
    %v110 = vld [vmem:[#allocation6 + $0x78] sm:$0xff]
    %v111 = vld [vmem:[%s3] sm:$0x3]
    %v113 = vperm.slane %v111, 0
    %v114 = vperm.slane %v111, 1
    %vm117 = vcmask 523264
    %v119 = vsel %vm117, %v87, 0
    %v122 = vsel %vm117, %v88, 0
    %v125 = vsel %vm117, %v89, 0
    %v128 = vsel %vm117, %v90, 0
    %v131 = vsel %vm117, %v91, 0
    %v134 = vsel %vm117, %v92, 0
    %v137 = vsel %vm117, %v93, 0
    %v140 = vsel %vm117, %v94, 0
    %142 = vmatpush.msra.mxu0 0.0
    %143 = vmatpush.msra.mxu0 0.0
    %144 = vmatpush.msra.mxu0 0.0
    %145 = vmatpush.msra.mxu0 0.0
    %146 = vmatpush.msra.mxu0 0.0
    %147 = vmatpush.msra.mxu0 0.0
    %148 = vmatpush.msra.mxu0 0.0
    %149 = vmatpush.msra.mxu0 0.0
    %150 = vmatpush.msra.mxu0 %v109
    %151 = vmatpush.msra.mxu0 %v107
    %152 = vmatpush.msra.mxu0 %v105
    %153 = vmatpush.msra.mxu0 %v103
    %154 = vmatpush.msra.mxu0 %v101
    %155 = vmatpush.msra.mxu0 %v99
    %156 = vmatpush.msra.mxu0 %v97
    %157 = vmatpush.msra.mxu0 %v95
    %158 = vmatmul.f32.gmra.mxu0 %v119
    %v159 = vpop.f32.mrf.mxu0
    %v160 = vadd.f32 %v113, %v159
    %161 = vmatmul.f32.gmra.mxu0 %v122
    %v162 = vpop.f32.mrf.mxu0
    %v163 = vadd.f32 %v113, %v162
    %164 = vmatmul.f32.gmra.mxu0 %v125
    %v165 = vpop.f32.mrf.mxu0
    %v166 = vadd.f32 %v113, %v165
    %167 = vmatmul.f32.gmra.mxu0 %v128
    %v168 = vpop.f32.mrf.mxu0
    %v169 = vadd.f32 %v113, %v168
    %170 = vmatmul.f32.gmra.mxu0 %v131
    %v171 = vpop.f32.mrf.mxu0
    %v172 = vadd.f32 %v113, %v171
    %173 = vmatmul.f32.gmra.mxu0 %v134
    %v174 = vpop.f32.mrf.mxu0
    %v175 = vadd.f32 %v113, %v174
    %176 = vmatmul.f32.gmra.mxu0 %v137
    %v177 = vpop.f32.mrf.mxu0
    %v178 = vadd.f32 %v113, %v177
    %179 = vmatmul.f32.gmra.mxu0 %v140
    %v180 = vpop.f32.mrf.mxu0
    %v181 = vadd.f32 %v113, %v180
    %182 = vdwg.mxu0
    %183 = vmatpush.msra.mxu0 0.0
    %184 = vmatpush.msra.mxu0 0.0
    %185 = vmatpush.msra.mxu0 0.0
    %186 = vmatpush.msra.mxu0 0.0
    %187 = vmatpush.msra.mxu0 0.0
    %188 = vmatpush.msra.mxu0 0.0
    %189 = vmatpush.msra.mxu0 0.0
    %190 = vmatpush.msra.mxu0 0.0
    %191 = vmatpush.msra.mxu0 %v110
    %192 = vmatpush.msra.mxu0 %v108
    %193 = vmatpush.msra.mxu0 %v106
    %194 = vmatpush.msra.mxu0 %v104
    %195 = vmatpush.msra.mxu0 %v102
    %196 = vmatpush.msra.mxu0 %v100
    %197 = vmatpush.msra.mxu0 %v98
    %198 = vmatpush.msra.mxu0 %v96
    %199 = vmatmul.f32.gmra.mxu0 %v119
    %v200 = vpop.f32.mrf.mxu0
    %v201 = vadd.f32 %v114, %v200
    %202 = vmatmul.f32.gmra.mxu0 %v122
    %v203 = vpop.f32.mrf.mxu0
    %v204 = vadd.f32 %v114, %v203
    %205 = vmatmul.f32.gmra.mxu0 %v125
    %v206 = vpop.f32.mrf.mxu0
    %v207 = vadd.f32 %v114, %v206
    %208 = vmatmul.f32.gmra.mxu0 %v128
    %v209 = vpop.f32.mrf.mxu0
    %v210 = vadd.f32 %v114, %v209
    %211 = vmatmul.f32.gmra.mxu0 %v131
    %v212 = vpop.f32.mrf.mxu0
    %v213 = vadd.f32 %v114, %v212
    %214 = vmatmul.f32.gmra.mxu0 %v134
    %v215 = vpop.f32.mrf.mxu0
    %v216 = vadd.f32 %v114, %v215
    %217 = vmatmul.f32.gmra.mxu0 %v137
    %v218 = vpop.f32.mrf.mxu0
    %v219 = vadd.f32 %v114, %v218
    %220 = vmatmul.f32.gmra.mxu0 %v140
    %v221 = vpop.f32.mrf.mxu0
    %v222 = vadd.f32 %v114, %v221
    %223 = vdwg.mxu0
    %224 = vst [vmem:[#allocation2] sm:$0xff] %v160
    %225 = vst [vmem:[#allocation2 + $0x8] sm:$0xff] %v201
    %226 = vst [vmem:[#allocation2 + $0x10] sm:$0xff] %v163
    %227 = vst [vmem:[#allocation2 + $0x18] sm:$0xff] %v204
    %228 = vst [vmem:[#allocation2 + $0x20] sm:$0xff] %v166
    %229 = vst [vmem:[#allocation2 + $0x28] sm:$0xff] %v207
    %230 = vst [vmem:[#allocation2 + $0x30] sm:$0xff] %v169
    %231 = vst [vmem:[#allocation2 + $0x38] sm:$0xff] %v210
    %232 = vst [vmem:[#allocation2 + $0x40] sm:$0xff] %v172
    %233 = vst [vmem:[#allocation2 + $0x48] sm:$0xff] %v213
    %234 = vst [vmem:[#allocation2 + $0x50] sm:$0xff] %v175
    %235 = vst [vmem:[#allocation2 + $0x58] sm:$0xff] %v216
    %236 = vst [vmem:[#allocation2 + $0x60] sm:$0xff] %v178
    %237 = vst [vmem:[#allocation2 + $0x68] sm:$0xff] %v219
    %238 = vst [vmem:[#allocation2 + $0x70] sm:$0xff] %v181
    %239 = vst [vmem:[#allocation2 + $0x78] sm:$0xff] %v222
    %v240 = vld [vmem:[#allocation8] sm:$0xff]
    %v241 = vld [vmem:[#allocation8 + $0x8] sm:$0xff]
    %v242 = vld [vmem:[#allocation8 + $0x10] sm:$0xff]
    %v243 = vld [vmem:[#allocation8 + $0x18] sm:$0xff]
    %v244 = vld [vmem:[#allocation8 + $0x20] sm:$0xff]
    %v245 = vld [vmem:[#allocation8 + $0x28] sm:$0xff]
    %v246 = vld [vmem:[#allocation8 + $0x30] sm:$0xff]
    %v247 = vld [vmem:[#allocation8 + $0x38] sm:$0xff]
    %v248 = vld [vmem:[#allocation8 + $0x40] sm:$0xff]
    %v249 = vld [vmem:[#allocation8 + $0x48] sm:$0xff]
    %v250 = vld [vmem:[#allocation8 + $0x50] sm:$0xff]
    %v251 = vld [vmem:[#allocation8 + $0x58] sm:$0xff]
    %v252 = vld [vmem:[#allocation8 + $0x60] sm:$0xff]
    %v253 = vld [vmem:[#allocation8 + $0x68] sm:$0xff]
    %v254 = vld [vmem:[#allocation8 + $0x70] sm:$0xff]
    %v255 = vld [vmem:[#allocation8 + $0x78] sm:$0xff]
    %v256 = vlaneseq
    %v257 = vand.u32 %v256, 127
    %v258 = vadd.s32 %v257, 128
    %vm259 = vcmp.ge.s32.totalorder %v257, 128
    %vm260 = vcmp.ge.s32.totalorder %v258, 128
    %vm261 = vcmp.lt.s32.totalorder %v257, 192
    %vm262 = vcmp.lt.s32.totalorder %v258, 192
    %vm263 = vmand %vm259, %vm261
    %vm264 = vmand %vm260, %vm262
    %s265 = smul.u32 0, 2
    %s266 = smul.addr %s265, 8
    %s267 = scalar_lea.vmem [#allocation2], %s266
    %v268 = vld [vmem:[%s267] sm:$0xff]
    %v269 = vld [vmem:[%s267 + $0x8] sm:$0xff]
    %v271 = vsel %vm117, 0.0, 0
    %273 = vmatpush.msra.mxu0 0.0
    %274 = vmatpush.msra.mxu0 0.0
    %275 = vmatpush.msra.mxu0 0.0
    %276 = vmatpush.msra.mxu0 0.0
    %277 = vmatpush.msra.mxu0 0.0
    %278 = vmatpush.msra.mxu0 0.0
    %279 = vmatpush.msra.mxu0 0.0
    %280 = vmatpush.msra.mxu0 0.0
    %281 = vmatpush.msra.mxu0 %v254
    %282 = vmatpush.msra.mxu0 %v252
    %283 = vmatpush.msra.mxu0 %v250
    %284 = vmatpush.msra.mxu0 %v248
    %285 = vmatpush.msra.mxu0 %v246
    %286 = vmatpush.msra.mxu0 %v244
    %287 = vmatpush.msra.mxu0 %v242
    %288 = vmatpush.msra.mxu0 %v240
    %289 = vmatmul.f32.gmra.mxu0 %v271
    %v290 = vpop.f32.mrf.mxu0
    %v291 = vadd.f32 0.0, %v290
    %292 = vdwg.mxu0
    %293 = vmatpush.msra.mxu0 0.0
    %294 = vmatpush.msra.mxu0 0.0
    %295 = vmatpush.msra.mxu0 0.0
    %296 = vmatpush.msra.mxu0 0.0
    %297 = vmatpush.msra.mxu0 0.0
    %298 = vmatpush.msra.mxu0 0.0
    %299 = vmatpush.msra.mxu0 0.0
    %300 = vmatpush.msra.mxu0 0.0
    %301 = vmatpush.msra.mxu0 %v255
    %302 = vmatpush.msra.mxu0 %v253
    %303 = vmatpush.msra.mxu0 %v251
    %304 = vmatpush.msra.mxu0 %v249
    %305 = vmatpush.msra.mxu0 %v247
    %306 = vmatpush.msra.mxu0 %v245
    %307 = vmatpush.msra.mxu0 %v243
    %308 = vmatpush.msra.mxu0 %v241
    %309 = vmatmul.f32.gmra.mxu0 %v271
    %v310 = vpop.f32.mrf.mxu0
    %v311 = vadd.f32 0.0, %v310
    %312 = vdwg.mxu0
    %v313 = vadd.f32 %v268, %v291
    %v314 = vadd.f32 %v269, %v311
    %v315 = vtanh.pop %v313
    %v316 = vtanh.pop %v314
    %v317 = vmul.f32 %v315, 0.5
    %v318 = vmul.f32 %v316, 0.5
    %v319 = vadd.f32 %v317, 0.5
    %v320 = vadd.f32 %v318, 0.5
    %v321 = vsel %vm263, %v315, %v319
    %v322 = vsel %vm264, %v316, %v320
    %v323 = vmul.f32 %v321, 0.0
    %v324 = vmul.f32 %v321, %v322
    %326 = vrot.lane.b32.xlu0 %v324, 64
    %v327 = vpop.permute.xlu0 %326
    %v329 = vadd.f32 %v323, %v327
    %v330 = vtanh.pop %v329
    %v331 = vmul.f32 %v322, %v330
    %s332 = smul.u32 1, 2
    %s333 = smul.addr %s332, 8
    %s334 = scalar_lea.vmem [#allocation2], %s333
    %v335 = vld [vmem:[%s334] sm:$0xff]
    %v336 = vld [vmem:[%s334 + $0x8] sm:$0xff]
    %338 = vrot.lane.b32.xlu0 %v331, 64
    %v339 = vpop.permute.xlu0 %338
    %v340 = vsel %vm117, %v339, 0
    %342 = vmatpush.msra.mxu0 0.0
    %343 = vmatpush.msra.mxu0 0.0
    %344 = vmatpush.msra.mxu0 0.0
    %345 = vmatpush.msra.mxu0 0.0
    %346 = vmatpush.msra.mxu0 0.0
    %347 = vmatpush.msra.mxu0 0.0
    %348 = vmatpush.msra.mxu0 0.0
    %349 = vmatpush.msra.mxu0 0.0
    %350 = vmatpush.msra.mxu0 %v254
    %351 = vmatpush.msra.mxu0 %v252
    %352 = vmatpush.msra.mxu0 %v250
    %353 = vmatpush.msra.mxu0 %v248
    %354 = vmatpush.msra.mxu0 %v246
    %355 = vmatpush.msra.mxu0 %v244
    %356 = vmatpush.msra.mxu0 %v242
    %357 = vmatpush.msra.mxu0 %v240
    %358 = vmatmul.f32.gmra.mxu0 %v340
    %v359 = vpop.f32.mrf.mxu0
    %v360 = vadd.f32 0.0, %v359
    %361 = vdwg.mxu0
    %362 = vmatpush.msra.mxu0 0.0
    %363 = vmatpush.msra.mxu0 0.0
    %364 = vmatpush.msra.mxu0 0.0
    %365 = vmatpush.msra.mxu0 0.0
    %366 = vmatpush.msra.mxu0 0.0
    %367 = vmatpush.msra.mxu0 0.0
    %368 = vmatpush.msra.mxu0 0.0
    %369 = vmatpush.msra.mxu0 0.0
    %370 = vmatpush.msra.mxu0 %v255
    %371 = vmatpush.msra.mxu0 %v253
    %372 = vmatpush.msra.mxu0 %v251
    %373 = vmatpush.msra.mxu0 %v249
    %374 = vmatpush.msra.mxu0 %v247
    %375 = vmatpush.msra.mxu0 %v245
    %376 = vmatpush.msra.mxu0 %v243
    %377 = vmatpush.msra.mxu0 %v241
    %378 = vmatmul.f32.gmra.mxu0 %v340
    %v379 = vpop.f32.mrf.mxu0
    %v380 = vadd.f32 0.0, %v379
    %381 = vdwg.mxu0
    %v382 = vadd.f32 %v335, %v360
    %v383 = vadd.f32 %v336, %v380
    %v384 = vtanh.pop %v382
    %v385 = vtanh.pop %v383
    %v386 = vmul.f32 %v384, 0.5
    %v387 = vmul.f32 %v385, 0.5
    %v388 = vadd.f32 %v386, 0.5
    %v389 = vadd.f32 %v387, 0.5
    %v390 = vsel %vm263, %v384, %v388
    %v391 = vsel %vm264, %v385, %v389
    %v392 = vmul.f32 %v390, %v329
    %v393 = vmul.f32 %v390, %v391
    %395 = vrot.lane.b32.xlu0 %v393, 64
    %v396 = vpop.permute.xlu0 %395
    %v398 = vadd.f32 %v392, %v396
    %v399 = vtanh.pop %v398
    %v400 = vmul.f32 %v391, %v399
    %s401 = smul.u32 2, 2
    %s402 = smul.addr %s401, 8
    %s403 = scalar_lea.vmem [#allocation2], %s402
    %v404 = vld [vmem:[%s403] sm:$0xff]
    %v405 = vld [vmem:[%s403 + $0x8] sm:$0xff]
    %407 = vrot.lane.b32.xlu0 %v400, 64
    %v408 = vpop.permute.xlu0 %407
    %v409 = vsel %vm117, %v408, 0
    %411 = vmatpush.msra.mxu0 0.0
    %412 = vmatpush.msra.mxu0 0.0
    %413 = vmatpush.msra.mxu0 0.0
    %414 = vmatpush.msra.mxu0 0.0
    %415 = vmatpush.msra.mxu0 0.0
    %416 = vmatpush.msra.mxu0 0.0
    %417 = vmatpush.msra.mxu0 0.0
    %418 = vmatpush.msra.mxu0 0.0
    %419 = vmatpush.msra.mxu0 %v254
    %420 = vmatpush.msra.mxu0 %v252
    %421 = vmatpush.msra.mxu0 %v250
    %422 = vmatpush.msra.mxu0 %v248
    %423 = vmatpush.msra.mxu0 %v246
    %424 = vmatpush.msra.mxu0 %v244
    %425 = vmatpush.msra.mxu0 %v242
    %426 = vmatpush.msra.mxu0 %v240
    %427 = vmatmul.f32.gmra.mxu0 %v409
    %v428 = vpop.f32.mrf.mxu0
    %v429 = vadd.f32 0.0, %v428
    %430 = vdwg.mxu0
    %431 = vmatpush.msra.mxu0 0.0
    %432 = vmatpush.msra.mxu0 0.0
    %433 = vmatpush.msra.mxu0 0.0
    %434 = vmatpush.msra.mxu0 0.0
    %435 = vmatpush.msra.mxu0 0.0
    %436 = vmatpush.msra.mxu0 0.0
    %437 = vmatpush.msra.mxu0 0.0
    %438 = vmatpush.msra.mxu0 0.0
    %439 = vmatpush.msra.mxu0 %v255
    %440 = vmatpush.msra.mxu0 %v253
    %441 = vmatpush.msra.mxu0 %v251
    %442 = vmatpush.msra.mxu0 %v249
    %443 = vmatpush.msra.mxu0 %v247
    %444 = vmatpush.msra.mxu0 %v245
    %445 = vmatpush.msra.mxu0 %v243
    %446 = vmatpush.msra.mxu0 %v241
    %447 = vmatmul.f32.gmra.mxu0 %v409
    %v448 = vpop.f32.mrf.mxu0
    %v449 = vadd.f32 0.0, %v448
    %450 = vdwg.mxu0
    %v451 = vadd.f32 %v404, %v429
    %v452 = vadd.f32 %v405, %v449
    %v453 = vtanh.pop %v451
    %v454 = vtanh.pop %v452
    %v455 = vmul.f32 %v453, 0.5
    %v456 = vmul.f32 %v454, 0.5
    %v457 = vadd.f32 %v455, 0.5
    %v458 = vadd.f32 %v456, 0.5
    %v459 = vsel %vm263, %v453, %v457
    %v460 = vsel %vm264, %v454, %v458
    %v461 = vmul.f32 %v459, %v398
    %v462 = vmul.f32 %v459, %v460
    %464 = vrot.lane.b32.xlu0 %v462, 64
    %v465 = vpop.permute.xlu0 %464
    %v467 = vadd.f32 %v461, %v465
    %v468 = vtanh.pop %v467
    %v469 = vmul.f32 %v460, %v468
    %s470 = smul.u32 3, 2
    %s471 = smul.addr %s470, 8
    %s472 = scalar_lea.vmem [#allocation2], %s471
    %v473 = vld [vmem:[%s472] sm:$0xff]
    %v474 = vld [vmem:[%s472 + $0x8] sm:$0xff]
    %476 = vrot.lane.b32.xlu0 %v469, 64
    %v477 = vpop.permute.xlu0 %476
    %v478 = vsel %vm117, %v477, 0
    %480 = vmatpush.msra.mxu0 0.0
    %481 = vmatpush.msra.mxu0 0.0
    %482 = vmatpush.msra.mxu0 0.0
    %483 = vmatpush.msra.mxu0 0.0
    %484 = vmatpush.msra.mxu0 0.0
    %485 = vmatpush.msra.mxu0 0.0
    %486 = vmatpush.msra.mxu0 0.0
    %487 = vmatpush.msra.mxu0 0.0
    %488 = vmatpush.msra.mxu0 %v254
    %489 = vmatpush.msra.mxu0 %v252
    %490 = vmatpush.msra.mxu0 %v250
    %491 = vmatpush.msra.mxu0 %v248
    %492 = vmatpush.msra.mxu0 %v246
    %493 = vmatpush.msra.mxu0 %v244
    %494 = vmatpush.msra.mxu0 %v242
    %495 = vmatpush.msra.mxu0 %v240
    %496 = vmatmul.f32.gmra.mxu0 %v478
    %v497 = vpop.f32.mrf.mxu0
    %v498 = vadd.f32 0.0, %v497
    %499 = vdwg.mxu0
    %500 = vmatpush.msra.mxu0 0.0
    %501 = vmatpush.msra.mxu0 0.0
    %502 = vmatpush.msra.mxu0 0.0
    %503 = vmatpush.msra.mxu0 0.0
    %504 = vmatpush.msra.mxu0 0.0
    %505 = vmatpush.msra.mxu0 0.0
    %506 = vmatpush.msra.mxu0 0.0
    %507 = vmatpush.msra.mxu0 0.0
    %508 = vmatpush.msra.mxu0 %v255
    %509 = vmatpush.msra.mxu0 %v253
    %510 = vmatpush.msra.mxu0 %v251
    %511 = vmatpush.msra.mxu0 %v249
    %512 = vmatpush.msra.mxu0 %v247
    %513 = vmatpush.msra.mxu0 %v245
    %514 = vmatpush.msra.mxu0 %v243
    %515 = vmatpush.msra.mxu0 %v241
    %516 = vmatmul.f32.gmra.mxu0 %v478
    %v517 = vpop.f32.mrf.mxu0
    %v518 = vadd.f32 0.0, %v517
    %519 = vdwg.mxu0
    %v520 = vadd.f32 %v473, %v498
    %v521 = vadd.f32 %v474, %v518
    %v522 = vtanh.pop %v520
    %v523 = vtanh.pop %v521
    %v524 = vmul.f32 %v522, 0.5
    %v525 = vmul.f32 %v523, 0.5
    %v526 = vadd.f32 %v524, 0.5
    %v527 = vadd.f32 %v525, 0.5
    %v528 = vsel %vm263, %v522, %v526
    %v529 = vsel %vm264, %v523, %v527
    %v530 = vmul.f32 %v528, %v467
    %v531 = vmul.f32 %v528, %v529
    %533 = vrot.lane.b32.xlu0 %v531, 64
    %v534 = vpop.permute.xlu0 %533
    %v536 = vadd.f32 %v530, %v534
    %v537 = vtanh.pop %v536
    %v538 = vmul.f32 %v529, %v537
    %s539 = smul.u32 4, 2
    %s540 = smul.addr %s539, 8
    %s541 = scalar_lea.vmem [#allocation2], %s540
    %v542 = vld [vmem:[%s541] sm:$0xff]
    %v543 = vld [vmem:[%s541 + $0x8] sm:$0xff]
    %545 = vrot.lane.b32.xlu0 %v538, 64
    %v546 = vpop.permute.xlu0 %545
    %v547 = vsel %vm117, %v546, 0
    %549 = vmatpush.msra.mxu0 0.0
    %550 = vmatpush.msra.mxu0 0.0
    %551 = vmatpush.msra.mxu0 0.0
    %552 = vmatpush.msra.mxu0 0.0
    %553 = vmatpush.msra.mxu0 0.0
    %554 = vmatpush.msra.mxu0 0.0
    %555 = vmatpush.msra.mxu0 0.0
    %556 = vmatpush.msra.mxu0 0.0
    %557 = vmatpush.msra.mxu0 %v254
    %558 = vmatpush.msra.mxu0 %v252
    %559 = vmatpush.msra.mxu0 %v250
    %560 = vmatpush.msra.mxu0 %v248
    %561 = vmatpush.msra.mxu0 %v246
    %562 = vmatpush.msra.mxu0 %v244
    %563 = vmatpush.msra.mxu0 %v242
    %564 = vmatpush.msra.mxu0 %v240
    %565 = vmatmul.f32.gmra.mxu0 %v547
    %v566 = vpop.f32.mrf.mxu0
    %v567 = vadd.f32 0.0, %v566
    %568 = vdwg.mxu0
    %569 = vmatpush.msra.mxu0 0.0
    %570 = vmatpush.msra.mxu0 0.0
    %571 = vmatpush.msra.mxu0 0.0
    %572 = vmatpush.msra.mxu0 0.0
    %573 = vmatpush.msra.mxu0 0.0
    %574 = vmatpush.msra.mxu0 0.0
    %575 = vmatpush.msra.mxu0 0.0
    %576 = vmatpush.msra.mxu0 0.0
    %577 = vmatpush.msra.mxu0 %v255
    %578 = vmatpush.msra.mxu0 %v253
    %579 = vmatpush.msra.mxu0 %v251
    %580 = vmatpush.msra.mxu0 %v249
    %581 = vmatpush.msra.mxu0 %v247
    %582 = vmatpush.msra.mxu0 %v245
    %583 = vmatpush.msra.mxu0 %v243
    %584 = vmatpush.msra.mxu0 %v241
    %585 = vmatmul.f32.gmra.mxu0 %v547
    %v586 = vpop.f32.mrf.mxu0
    %v587 = vadd.f32 0.0, %v586
    %588 = vdwg.mxu0
    %v589 = vadd.f32 %v542, %v567
    %v590 = vadd.f32 %v543, %v587
    %v591 = vtanh.pop %v589
    %v592 = vtanh.pop %v590
    %v593 = vmul.f32 %v591, 0.5
    %v594 = vmul.f32 %v592, 0.5
    %v595 = vadd.f32 %v593, 0.5
    %v596 = vadd.f32 %v594, 0.5
    %v597 = vsel %vm263, %v591, %v595
    %v598 = vsel %vm264, %v592, %v596
    %v599 = vmul.f32 %v597, %v536
    %v600 = vmul.f32 %v597, %v598
    %602 = vrot.lane.b32.xlu0 %v600, 64
    %v603 = vpop.permute.xlu0 %602
    %v605 = vadd.f32 %v599, %v603
    %v606 = vtanh.pop %v605
    %v607 = vmul.f32 %v598, %v606
    %s608 = smul.u32 5, 2
    %s609 = smul.addr %s608, 8
    %s610 = scalar_lea.vmem [#allocation2], %s609
    %v611 = vld [vmem:[%s610] sm:$0xff]
    %v612 = vld [vmem:[%s610 + $0x8] sm:$0xff]
    %614 = vrot.lane.b32.xlu0 %v607, 64
    %v615 = vpop.permute.xlu0 %614
    %v616 = vsel %vm117, %v615, 0
    %618 = vmatpush.msra.mxu0 0.0
    %619 = vmatpush.msra.mxu0 0.0
    %620 = vmatpush.msra.mxu0 0.0
    %621 = vmatpush.msra.mxu0 0.0
    %622 = vmatpush.msra.mxu0 0.0
    %623 = vmatpush.msra.mxu0 0.0
    %624 = vmatpush.msra.mxu0 0.0
    %625 = vmatpush.msra.mxu0 0.0
    %626 = vmatpush.msra.mxu0 %v254
    %627 = vmatpush.msra.mxu0 %v252
    %628 = vmatpush.msra.mxu0 %v250
    %629 = vmatpush.msra.mxu0 %v248
    %630 = vmatpush.msra.mxu0 %v246
    %631 = vmatpush.msra.mxu0 %v244
    %632 = vmatpush.msra.mxu0 %v242
    %633 = vmatpush.msra.mxu0 %v240
    %634 = vmatmul.f32.gmra.mxu0 %v616
    %v635 = vpop.f32.mrf.mxu0
    %v636 = vadd.f32 0.0, %v635
    %637 = vdwg.mxu0
    %638 = vmatpush.msra.mxu0 0.0
    %639 = vmatpush.msra.mxu0 0.0
    %640 = vmatpush.msra.mxu0 0.0
    %641 = vmatpush.msra.mxu0 0.0
    %642 = vmatpush.msra.mxu0 0.0
    %643 = vmatpush.msra.mxu0 0.0
    %644 = vmatpush.msra.mxu0 0.0
    %645 = vmatpush.msra.mxu0 0.0
    %646 = vmatpush.msra.mxu0 %v255
    %647 = vmatpush.msra.mxu0 %v253
    %648 = vmatpush.msra.mxu0 %v251
    %649 = vmatpush.msra.mxu0 %v249
    %650 = vmatpush.msra.mxu0 %v247
    %651 = vmatpush.msra.mxu0 %v245
    %652 = vmatpush.msra.mxu0 %v243
    %653 = vmatpush.msra.mxu0 %v241
    %654 = vmatmul.f32.gmra.mxu0 %v616
    %v655 = vpop.f32.mrf.mxu0
    %v656 = vadd.f32 0.0, %v655
    %657 = vdwg.mxu0
    %v658 = vadd.f32 %v611, %v636
    %v659 = vadd.f32 %v612, %v656
    %v660 = vtanh.pop %v658
    %v661 = vtanh.pop %v659
    %v662 = vmul.f32 %v660, 0.5
    %v663 = vmul.f32 %v661, 0.5
    %v664 = vadd.f32 %v662, 0.5
    %v665 = vadd.f32 %v663, 0.5
    %v666 = vsel %vm263, %v660, %v664
    %v667 = vsel %vm264, %v661, %v665
    %v668 = vmul.f32 %v666, %v605
    %v669 = vmul.f32 %v666, %v667
    %671 = vrot.lane.b32.xlu0 %v669, 64
    %v672 = vpop.permute.xlu0 %671
    %v674 = vadd.f32 %v668, %v672
    %v675 = vtanh.pop %v674
    %v676 = vmul.f32 %v667, %v675
    %s677 = smul.u32 6, 2
    %s678 = smul.addr %s677, 8
    %s679 = scalar_lea.vmem [#allocation2], %s678
    %v680 = vld [vmem:[%s679] sm:$0xff]
    %v681 = vld [vmem:[%s679 + $0x8] sm:$0xff]
    %683 = vrot.lane.b32.xlu0 %v676, 64
    %v684 = vpop.permute.xlu0 %683
    %v685 = vsel %vm117, %v684, 0
    %687 = vmatpush.msra.mxu0 0.0
    %688 = vmatpush.msra.mxu0 0.0
    %689 = vmatpush.msra.mxu0 0.0
    %690 = vmatpush.msra.mxu0 0.0
    %691 = vmatpush.msra.mxu0 0.0
    %692 = vmatpush.msra.mxu0 0.0
    %693 = vmatpush.msra.mxu0 0.0
    %694 = vmatpush.msra.mxu0 0.0
    %695 = vmatpush.msra.mxu0 %v254
    %696 = vmatpush.msra.mxu0 %v252
    %697 = vmatpush.msra.mxu0 %v250
    %698 = vmatpush.msra.mxu0 %v248
    %699 = vmatpush.msra.mxu0 %v246
    %700 = vmatpush.msra.mxu0 %v244
    %701 = vmatpush.msra.mxu0 %v242
    %702 = vmatpush.msra.mxu0 %v240
    %703 = vmatmul.f32.gmra.mxu0 %v685
    %v704 = vpop.f32.mrf.mxu0
    %v705 = vadd.f32 0.0, %v704
    %706 = vdwg.mxu0
    %707 = vmatpush.msra.mxu0 0.0
    %708 = vmatpush.msra.mxu0 0.0
    %709 = vmatpush.msra.mxu0 0.0
    %710 = vmatpush.msra.mxu0 0.0
    %711 = vmatpush.msra.mxu0 0.0
    %712 = vmatpush.msra.mxu0 0.0
    %713 = vmatpush.msra.mxu0 0.0
    %714 = vmatpush.msra.mxu0 0.0
    %715 = vmatpush.msra.mxu0 %v255
    %716 = vmatpush.msra.mxu0 %v253
    %717 = vmatpush.msra.mxu0 %v251
    %718 = vmatpush.msra.mxu0 %v249
    %719 = vmatpush.msra.mxu0 %v247
    %720 = vmatpush.msra.mxu0 %v245
    %721 = vmatpush.msra.mxu0 %v243
    %722 = vmatpush.msra.mxu0 %v241
    %723 = vmatmul.f32.gmra.mxu0 %v685
    %v724 = vpop.f32.mrf.mxu0
    %v725 = vadd.f32 0.0, %v724
    %726 = vdwg.mxu0
    %v727 = vadd.f32 %v680, %v705
    %v728 = vadd.f32 %v681, %v725
    %v729 = vtanh.pop %v727
    %v730 = vtanh.pop %v728
    %v731 = vmul.f32 %v729, 0.5
    %v732 = vmul.f32 %v730, 0.5
    %v733 = vadd.f32 %v731, 0.5
    %v734 = vadd.f32 %v732, 0.5
    %v735 = vsel %vm263, %v729, %v733
    %v736 = vsel %vm264, %v730, %v734
    %v737 = vmul.f32 %v735, %v674
    %v738 = vmul.f32 %v735, %v736
    %740 = vrot.lane.b32.xlu0 %v738, 64
    %v741 = vpop.permute.xlu0 %740
    %v743 = vadd.f32 %v737, %v741
    %v744 = vtanh.pop %v743
    %v745 = vmul.f32 %v736, %v744
    %s746 = smul.u32 7, 2
    %s747 = smul.addr %s746, 8
    %s748 = scalar_lea.vmem [#allocation2], %s747
    %v749 = vld [vmem:[%s748] sm:$0xff]
    %v750 = vld [vmem:[%s748 + $0x8] sm:$0xff]
    %752 = vrot.lane.b32.xlu0 %v745, 64
    %v753 = vpop.permute.xlu0 %752
    %v754 = vsel %vm117, %v753, 0
    %756 = vmatpush.msra.mxu0 0.0
    %757 = vmatpush.msra.mxu0 0.0
    %758 = vmatpush.msra.mxu0 0.0
    %759 = vmatpush.msra.mxu0 0.0
    %760 = vmatpush.msra.mxu0 0.0
    %761 = vmatpush.msra.mxu0 0.0
    %762 = vmatpush.msra.mxu0 0.0
    %763 = vmatpush.msra.mxu0 0.0
    %764 = vmatpush.msra.mxu0 %v254
    %765 = vmatpush.msra.mxu0 %v252
    %766 = vmatpush.msra.mxu0 %v250
    %767 = vmatpush.msra.mxu0 %v248
    %768 = vmatpush.msra.mxu0 %v246
    %769 = vmatpush.msra.mxu0 %v244
    %770 = vmatpush.msra.mxu0 %v242
    %771 = vmatpush.msra.mxu0 %v240
    %772 = vmatmul.f32.gmra.mxu0 %v754
    %v773 = vpop.f32.mrf.mxu0
    %v774 = vadd.f32 0.0, %v773
    %775 = vdwg.mxu0
    %776 = vmatpush.msra.mxu0 0.0
    %777 = vmatpush.msra.mxu0 0.0
    %778 = vmatpush.msra.mxu0 0.0
    %779 = vmatpush.msra.mxu0 0.0
    %780 = vmatpush.msra.mxu0 0.0
    %781 = vmatpush.msra.mxu0 0.0
    %782 = vmatpush.msra.mxu0 0.0
    %783 = vmatpush.msra.mxu0 0.0
    %784 = vmatpush.msra.mxu0 %v255
    %785 = vmatpush.msra.mxu0 %v253
    %786 = vmatpush.msra.mxu0 %v251
    %787 = vmatpush.msra.mxu0 %v249
    %788 = vmatpush.msra.mxu0 %v247
    %789 = vmatpush.msra.mxu0 %v245
    %790 = vmatpush.msra.mxu0 %v243
    %791 = vmatpush.msra.mxu0 %v241
    %792 = vmatmul.f32.gmra.mxu0 %v754
    %v793 = vpop.f32.mrf.mxu0
    %v794 = vadd.f32 0.0, %v793
    %795 = vdwg.mxu0
    %v796 = vadd.f32 %v749, %v774
    %v797 = vadd.f32 %v750, %v794
    %v798 = vtanh.pop %v796
    %v799 = vtanh.pop %v797
    %v800 = vmul.f32 %v798, 0.5
    %v801 = vmul.f32 %v799, 0.5
    %v802 = vadd.f32 %v800, 0.5
    %v803 = vadd.f32 %v801, 0.5
    %v804 = vsel %vm263, %v798, %v802
    %v805 = vsel %vm264, %v799, %v803
    %v806 = vmul.f32 %v804, %v743
    %v807 = vmul.f32 %v804, %v805
    %809 = vrot.lane.b32.xlu0 %v807, 64
    %v810 = vpop.permute.xlu0 %809
    %v812 = vadd.f32 %v806, %v810
    %v813 = vtanh.pop %v812
    %v814 = vmul.f32 %v805, %v813
    %v815 = vld [vmem:[#allocation9] sm:$0xff]
    %v816 = vld [vmem:[#allocation9 + $0x8] sm:$0xff]
    %v817 = vld [vmem:[#allocation9 + $0x10] sm:$0xff]
    %v818 = vld [vmem:[#allocation9 + $0x18] sm:$0xff]
    %v819 = vld [vmem:[#allocation9 + $0x20] sm:$0xff]
    %v820 = vld [vmem:[#allocation9 + $0x28] sm:$0xff]
    %v821 = vld [vmem:[#allocation9 + $0x30] sm:$0xff]
    %v822 = vld [vmem:[#allocation9 + $0x38] sm:$0xff]
    %v823 = vld [vmem:[%s5] sm:$0x1]
    %v825 = vperm.slane %v823, 0
    %828 = vrot.lane.b32.xlu0 %v814, 64
    %v829 = vpop.permute.xlu0 %828
    %v830 = vsel %vm117, %v829, 0
    %832 = vmatpush.msra.mxu0 0.0
    %833 = vmatpush.msra.mxu0 0.0
    %834 = vmatpush.msra.mxu0 0.0
    %835 = vmatpush.msra.mxu0 0.0
    %836 = vmatpush.msra.mxu0 0.0
    %837 = vmatpush.msra.mxu0 0.0
    %838 = vmatpush.msra.mxu0 0.0
    %839 = vmatpush.msra.mxu0 0.0
    %840 = vmatpush.msra.mxu0 %v822
    %841 = vmatpush.msra.mxu0 %v821
    %842 = vmatpush.msra.mxu0 %v820
    %843 = vmatpush.msra.mxu0 %v819
    %844 = vmatpush.msra.mxu0 %v818
    %845 = vmatpush.msra.mxu0 %v817
    %846 = vmatpush.msra.mxu0 %v816
    %847 = vmatpush.msra.mxu0 %v815
    %848 = vmatmul.f32.gmra.mxu0 %v830
    %v849 = vpop.f32.mrf.mxu0
    %v850 = vadd.f32 %v825, %v849
    %851 = vdwg.mxu0
    %852 = vst [vmem:[#allocation11] sm:$0xff] %v850
    // Predicated region
    $region42: #{tpu_custom_call.1} parent=1 // pred_check
      _
    $region43: #{tpu_custom_call.1} parent=1 // pred_check_branch
      %854 = sbr.rel (0) target = $region45
    $region44: #{tpu_custom_call.1} parent=1 // pred_region
      %856 = vsyncadd [#allocation5], 0
      %s858 = sshll.u32 [#allocation11], 4
      %s859 = int_to_ptr.vmem [resolvable:$true] %s858
      %s860 = sshll.u32 %s6, 4
      %s861 = int_to_ptr.hbm [resolvable:$true] %s860
      %863 = dma.vmem_to_hbm [thread:$0]  %s859, 128, %s861, [#allocation5]
    $region45: #{tpu_custom_call.1} parent=1 // pred_fallthru
      _
    // Predicated region
    $region46: #{tpu_custom_call.1} parent=1 // pred_check
      _
    $region47: #{tpu_custom_call.1} parent=1 // pred_check_branch
      %865 = sbr.rel (0) target = $region49
    $region48: #{tpu_custom_call.1} parent=1 // pred_region
      %867 = dma.done [#allocation5], 128
    $region49: #{tpu_custom_call.1} parent=1 // pred_fallthru
      _
    %868 = vsyncpa [#allocation4], 1
    %869 = vsyncpa [#allocation7], 1
    %870 = vsyncpa [#allocation10], 1
    %871 = vsyncpa [#allocation5], 1

</llo_original>
